<compile_context>
chip_gen: v7x
topology: tpu7x:2x2x1
jax: 0.10.0
libtpu: 0.0.40
codegen_flags: <defaults>
</compile_context>

<pallas_src>
import jax
import jax.numpy as jnp
from jax.experimental import pallas as pl
from jax.experimental.pallas import tpu as pltpu

EPS = 1e-3
LANES = 128


def _round_up(x, m):
    return ((x + m - 1) // m) * m


def _reduce_kernel(x_ref, sum_ref, sumsq_ref):
    """Phase 1: accumulate sum and sum-of-squares over streamed (tile_rows, 128) blocks."""
    i = pl.program_id(0)

    @pl.when(i == 0)
    def _():
        sum_ref[...] = jnp.zeros_like(sum_ref)
        sumsq_ref[...] = jnp.zeros_like(sumsq_ref)

    x = x_ref[...].astype(jnp.float32)  # per-tile upcast (no-op when already f32)
    sum_ref[...] += jnp.sum(x, keepdims=True)
    sumsq_ref[...] += jnp.sum(x * x, keepdims=True)


def _normalize_kernel(x_ref, scale_ref, shift_ref, o_ref):
    """Phase 2: o = x * scale + shift (affine folded into two scalars)."""
    scale = scale_ref[0]
    shift = shift_ref[0]
    o_ref[...] = (x_ref[...].astype(jnp.float32) * scale + shift).astype(o_ref.dtype)


def feature_batch_norm(x, gamma, beta, *, max_tile_rows=512):
    """x: (N, H, W) array. gamma, beta: shape (1,) BN affine params."""
    N, H, W = x.shape
    total = N * H * W

    # Lane-dense slab: (padded_rows, 128); pad tail with zeros (zeros do not change
    # sum / sumsq, and the true count `total` is used as the divisor).
    rows = pl.cdiv(total, LANES)
    tile_rows = min(max_tile_rows, _round_up(rows, 8))
    num_tiles = pl.cdiv(rows, tile_rows)
    padded_rows = num_tiles * tile_rows
    padded_total = padded_rows * LANES

    x_flat = x.reshape(-1)
    if padded_total != total:
        x_flat = jnp.pad(x_flat, (0, padded_total - total))
    x2d = x_flat.reshape(padded_rows, LANES)

    # --- Phase 1: streamed reduction (sum, sum of squares) ---
    sum_, sumsq = pl.pallas_call(
        _reduce_kernel,
        out_shape=(
            jax.ShapeDtypeStruct((1, 1), jnp.float32),
            jax.ShapeDtypeStruct((1, 1), jnp.float32),
        ),
        grid=(num_tiles,),
        in_specs=[pl.BlockSpec((tile_rows, LANES), lambda i: (i, 0))],
        out_specs=(
            pl.BlockSpec((1, 1), lambda i: (0, 0)),
            pl.BlockSpec((1, 1), lambda i: (0, 0)),
        ),
        compiler_params=pltpu.CompilerParams(dimension_semantics=("arbitrary",)),
    )(x2d)

    # Tiny scalar math: biased variance (PyTorch BN training-mode forward), folded affine.
    n = jnp.float32(total)
    mean = sum_[0, 0] / n
    var = jnp.maximum(sumsq[0, 0] / n - mean * mean, 0.0)
    inv_std = jax.lax.rsqrt(var + EPS)
    scale = gamma[0].astype(jnp.float32) * inv_std
    shift = beta[0].astype(jnp.float32) - mean * scale
    scale = scale.reshape(1)
    shift = shift.reshape(1)

    # --- Phase 2: streamed normalize ---
    out2d = pl.pallas_call(
        _normalize_kernel,
        out_shape=jax.ShapeDtypeStruct((padded_rows, LANES), x.dtype),
        grid=(num_tiles,),
        in_specs=[
            pl.BlockSpec((tile_rows, LANES), lambda i: (i, 0)),
            pl.BlockSpec(memory_space=pltpu.MemorySpace.SMEM),
            pl.BlockSpec(memory_space=pltpu.MemorySpace.SMEM),
        ],
        out_specs=pl.BlockSpec((tile_rows, LANES), lambda i: (i, 0)),
        compiler_params=pltpu.CompilerParams(dimension_semantics=("parallel",)),
    )(x2d, scale, shift)

    out_flat = out2d.reshape(-1)
    if padded_total != total:
        out_flat = out_flat[:total]
    return out_flat.reshape(N, H, W)


def _reference(x, gamma, beta):
    xf = x.astype(jnp.float32)
    mean = jnp.mean(xf)
    var = jnp.mean((xf - mean) ** 2)
    return ((xf - mean) * jax.lax.rsqrt(var + EPS) * gamma[0] + beta[0]).astype(x.dtype)


if __name__ == "__main__":
    key = jax.random.PRNGKey(0)

    # BN affine parameters (PyTorch default init).
    gamma = jnp.ones((1,), dtype=jnp.float32)
    beta = jnp.zeros((1,), dtype=jnp.float32)

    # Case 1: module-implied small shape (N, H, W); exercises the zero-padding path.
    N, H, W = 2, 16, 16
    x = jax.random.normal(key, (N, H, W), dtype=jnp.float32)
    out = jax.block_until_ready(feature_batch_norm(x, gamma, beta))
    ref = _reference(x, gamma, beta)
    assert out.shape == (N, H, W)
    assert jnp.allclose(out, ref, atol=1e-5, rtol=1e-5), "mismatch vs reference (case 1)"

    # Case 2: slightly larger input with a small tile so the multi-tile accumulator
    # / pipelined path is exercised (still small shapes).
    key2 = jax.random.PRNGKey(0)
    x2 = jax.random.normal(key2, (2, 32, 80), dtype=jnp.float32)
    out2 = jax.block_until_ready(feature_batch_norm(x2, gamma, beta, max_tile_rows=8))
    ref2 = _reference(x2, gamma, beta)
    assert out2.shape == x2.shape
    assert jnp.allclose(out2, ref2, atol=1e-5, rtol=1e-5), "mismatch vs reference (case 2)"

    print("KERNEL_OK")
</pallas_src>

<mosaic_0001>
module attributes {stable_mosaic.version = 11 : i64} {
  func.func @_reduce_kernel(%arg0: i32, %arg1: memref<8x128xf32, #tpu.memory_space<vmem>>, %arg2: memref<1x1xf32, #tpu.memory_space<vmem>>, %arg3: memref<1x1xf32, #tpu.memory_space<vmem>>) attributes {dimension_semantics = [#tpu.dimension_semantics<arbitrary>], iteration_bounds = array<i64: 1>, scalar_prefetch = 0 : i64, scratch_operands = 0 : i64, tpu.core_type = #tpu.core_type<tc>, window_params = [{transform_indices = @transform_0, window_bounds = array<i64: 8, 128>}, {pipeline_mode = #tpu.pipeline_mode<synchronous>, transform_indices = @transform_1, window_bounds = array<i64: 1, 1>}, {pipeline_mode = #tpu.pipeline_mode<synchronous>, transform_indices = @transform_2, window_bounds = array<i64: 1, 1>}]} {
    %c0_i32 = arith.constant 0 : i32
    %0 = arith.cmpi eq, %arg0, %c0_i32 : i32
    %1 = arith.extui %0 : i1 to i32
    %c0_i32_0 = arith.constant 0 : i32
    %2 = arith.cmpi ne, %1, %c0_i32_0 : i32
    scf.if %2 {
      %cst_11 = arith.constant 0.000000e+00 : f32
      %21 = vector.broadcast %cst_11 : f32 to vector<1x1xf32>
      %c0_12 = arith.constant 0 : index
      %c0_13 = arith.constant 0 : index
      %22 = vector.load %arg2[%c0_12, %c0_13] : memref<1x1xf32, #tpu.memory_space<vmem>>, vector<1x1xf32>
      tpu.vector_store %arg2[%c0_12, %c0_13], %21 {strides = array<i32>} : memref<1x1xf32, #tpu.memory_space<vmem>>, vector<1x1xf32>,
      %cst_14 = arith.constant 0.000000e+00 : f32
      %23 = vector.broadcast %cst_14 : f32 to vector<1x1xf32>
      %c0_15 = arith.constant 0 : index
      %c0_16 = arith.constant 0 : index
      %24 = vector.load %arg3[%c0_15, %c0_16] : memref<1x1xf32, #tpu.memory_space<vmem>>, vector<1x1xf32>
      tpu.vector_store %arg3[%c0_15, %c0_16], %23 {strides = array<i32>} : memref<1x1xf32, #tpu.memory_space<vmem>>, vector<1x1xf32>,
    } else {
    }
    %c0 = arith.constant 0 : index
    %c0_1 = arith.constant 0 : index
    %3 = vector.load %arg1[%c0, %c0_1] : memref<8x128xf32, #tpu.memory_space<vmem>>, vector<8x128xf32>
    %c0_2 = arith.constant 0 : index
    %c0_3 = arith.constant 0 : index
    %4 = vector.load %arg2[%c0_2, %c0_3] : memref<1x1xf32, #tpu.memory_space<vmem>>, vector<1x1xf32>
    %5 = vector.shape_cast %3 : vector<8x128xf32> to vector<1x8x128xf32>
    %cst = arith.constant dense<0.000000e+00> : vector<1xf32>
    %6 = vector.multi_reduction <add>, %5, %cst [1, 2] : vector<1x8x128xf32> to vector<1xf32>
    %7 = vector.shape_cast %6 : vector<1xf32> to vector<1x1x1xf32>
    %8 = vector.extract %7[0, 0, 0] : f32 from vector<1x1x1xf32>
    %9 = vector.broadcast %8 : f32 to vector<1x1xf32>
    %10 = arith.addf %4, %9 : vector<1x1xf32>
    %c0_4 = arith.constant 0 : index
    %c0_5 = arith.constant 0 : index
    %11 = vector.load %arg2[%c0_4, %c0_5] : memref<1x1xf32, #tpu.memory_space<vmem>>, vector<1x1xf32>
    tpu.vector_store %arg2[%c0_4, %c0_5], %10 {strides = array<i32>} : memref<1x1xf32, #tpu.memory_space<vmem>>, vector<1x1xf32>,
    %c0_6 = arith.constant 0 : index
    %c0_7 = arith.constant 0 : index
    %12 = vector.load %arg3[%c0_6, %c0_7] : memref<1x1xf32, #tpu.memory_space<vmem>>, vector<1x1xf32>
    %13 = arith.mulf %3, %3 : vector<8x128xf32>
    %14 = vector.shape_cast %13 : vector<8x128xf32> to vector<1x8x128xf32>
    %cst_8 = arith.constant dense<0.000000e+00> : vector<1xf32>
    %15 = vector.multi_reduction <add>, %14, %cst_8 [1, 2] : vector<1x8x128xf32> to vector<1xf32>
    %16 = vector.shape_cast %15 : vector<1xf32> to vector<1x1x1xf32>
    %17 = vector.extract %16[0, 0, 0] : f32 from vector<1x1x1xf32>
    %18 = vector.broadcast %17 : f32 to vector<1x1xf32>
    %19 = arith.addf %12, %18 : vector<1x1xf32>
    %c0_9 = arith.constant 0 : index
    %c0_10 = arith.constant 0 : index
    %20 = vector.load %arg3[%c0_9, %c0_10] : memref<1x1xf32, #tpu.memory_space<vmem>>, vector<1x1xf32>
    tpu.vector_store %arg3[%c0_9, %c0_10], %19 {strides = array<i32>} : memref<1x1xf32, #tpu.memory_space<vmem>>, vector<1x1xf32>,
    return
  }
  func.func @transform_0(%arg0: i32) -> (i32, i32) {
    %c0_i32 = arith.constant 0 : i32
    %c0_i32_0 = arith.constant 0 : i32
    return %arg0, %c0_i32 : i32, i32
  }
  func.func @transform_1(%arg0: i32) -> (i32, i32) {
    %c0_i32 = arith.constant 0 : i32
    %c0_i32_0 = arith.constant 0 : i32
    %c0_i32_1 = arith.constant 0 : i32
    return %c0_i32, %c0_i32_0 : i32, i32
  }
  func.func @transform_2(%arg0: i32) -> (i32, i32) {
    %c0_i32 = arith.constant 0 : i32
    %c0_i32_0 = arith.constant 0 : i32
    %c0_i32_1 = arith.constant 0 : i32
    return %c0_i32, %c0_i32_0 : i32, i32
  }
}

</mosaic_0001>

<llo_original>
// kernel: tpu_custom_call.1
$region0: #{tpu_custom_call.1}
  #allocation0 [shape = 'u32[]', space=smem, size = 0x4, offset = 0x4, fixed_abs, tag = 'smem constant byte address 0x4 - core index']
  #allocation1 [shape = 'u32[144,128]{1,0:T(1,128)}', space=vmem, size = 0x12000, scoped, tag = 'internal scratch']
  %s0 = inlined_call_operand.hbm [shape: f32[8,128], index: 0, kind: input, shape index: {}]
  %s1 = inlined_call_operand.hbm [shape: f32[1,1], index: 1, kind: output, shape index: {0}]
  %s2 = inlined_call_operand.hbm [shape: f32[1,1], index: 2, kind: output, shape index: {1}]
  %3 = xla_tuple %s1, %s2
  %s4 = sld [smem:[#allocation0]]
  $region30: #{tpu_custom_call.1} parent=0
    _
  %s6 = ssub.s32 1, %s4
  %s7 = scalar_select 0, %s6, %s4
  $region1: #{tpu_custom_call.1} parent=0
    #allocation2 [shape = 'u8[4096]{0}', space=vmem, size = 0x1000, scoped, tag = 'input window, operand 0, single buffered']
    #allocation3 [shape = 's32[1]{0}', space=sflag, size = 0x4, scoped, tag = 'scoped memory for tpu_custom_call.1']
    #allocation4 [shape = 's32[1]{0}', space=sflag, size = 0x4, scoped, tag = 'scoped memory for tpu_custom_call.1']
    #allocation5 [shape = 'u8[512]{0}', space=vmem, size = 0x400, scoped, tag = 'output window, operand 0, single buffered']
    #allocation6 [shape = 'u8[512]{0}', space=vmem, size = 0x400, scoped, tag = 'output window, operand 1, single buffered']
    #allocation7 [shape = 's32[1]{0}', space=sflag, size = 0x4, scoped, tag = 'scoped memory for tpu_custom_call.1']
    %8 = vsyncpa [#allocation3], 0
    %9 = vsyncpa [#allocation4], 0
    %10 = vsyncpa [#allocation7], 0
    // Predicated region
    $region2: #{tpu_custom_call.1} parent=1 // pred_check
      _
    $region3: #{tpu_custom_call.1} parent=1 // pred_check_branch
      %12 = sbr.rel (0) target = $region5
    $region4: #{tpu_custom_call.1} parent=1 // pred_region
      %s14 = ssub.s32 128, 128
      %15 = vsyncadd [#allocation3], %s14
      %s17 = sshll.u32 [#allocation2], 4
      %s18 = int_to_ptr.vmem [resolvable:$true] %s17
      %20 = dma.hbm_to_vmem [thread:$0]  %s0, 128, %s18, [#allocation3]
    $region5: #{tpu_custom_call.1} parent=1 // pred_fallthru
      _
    // Predicated region
    $region6: #{tpu_custom_call.1} parent=1 // pred_check
      _
    $region7: #{tpu_custom_call.1} parent=1 // pred_check_branch
      %22 = sbr.rel (0) target = $region9
    $region8: #{tpu_custom_call.1} parent=1 // pred_region
      %23 = dma.done [#allocation3], 128
    $region9: #{tpu_custom_call.1} parent=1 // pred_fallthru
      _
    %p24 = scmp.eq.s32.totalorder 0, 0
    // Predicated region
    $region10: #{tpu_custom_call.1} parent=1 // pred_check
      %p25 = pneg %p24
    $region11: #{tpu_custom_call.1} parent=1 // pred_check_branch
      %27 = sbr.rel (%p25) target = $region13
    $region12: #{tpu_custom_call.1} parent=1 // pred_region
      %vm28 = vcmask 0
      %29 = vst.msk [vmem:[#allocation5] sm:$0x1] %vm28, 0.0
      %30 = vst.msk [vmem:[#allocation6] sm:$0x1] %vm28, 0.0
    $region13: #{tpu_custom_call.1} parent=1 // pred_fallthru
      _
    %v31 = vld [vmem:[#allocation2] sm:$0xff]
    %v32 = vld [vmem:[#allocation5] sm:$0x1]
    %33 = vadd.xlane.f32.xlu0 %v31
    %v34 = vpop.xlane.xlu0 %33
    %v35 = vrot.slane %v34, 4
    %v36 = vadd.f32 %v34, %v35
    %v37 = vrot.slane %v36, 2
    %v38 = vadd.f32 %v36, %v37
    %v39 = vrot.slane %v38, 1
    %v40 = vadd.f32 %v38, %v39
    %s41 = vtos %v40
    %v42 = vstv %s41
    %v43 = vadd.f32 %v32, %v42
    %vm44 = vcmask 0
    %45 = vst.msk [vmem:[#allocation5] sm:$0x1] %vm44, %v43
    %v46 = vld [vmem:[#allocation6] sm:$0x1]
    %v47 = vmul.f32 %v31, %v31
    %48 = vadd.xlane.f32.xlu0 %v47
    %v49 = vpop.xlane.xlu0 %48
    %v50 = vrot.slane %v49, 4
    %v51 = vadd.f32 %v49, %v50
    %v52 = vrot.slane %v51, 2
    %v53 = vadd.f32 %v51, %v52
    %v54 = vrot.slane %v53, 1
    %v55 = vadd.f32 %v53, %v54
    %s56 = vtos %v55
    %v57 = vstv %s56
    %v58 = vadd.f32 %v46, %v57
    %59 = vst.msk [vmem:[#allocation6] sm:$0x1] %vm44, %v58
    // Predicated region
    $region14: #{tpu_custom_call.1} parent=1 // pred_check
      _
    $region15: #{tpu_custom_call.1} parent=1 // pred_check_branch
      %61 = sbr.rel (0) target = $region17
    $region16: #{tpu_custom_call.1} parent=1 // pred_region
      %s63 = ssub.s32 16, 16
      %64 = vsyncadd [#allocation4], %s63
      %s66 = sshll.u32 [#allocation5], 4
      %s67 = int_to_ptr.vmem [resolvable:$true] %s66
      %69 = dma.vmem_to_hbm [thread:$0]  %s67, 16, %s1, [#allocation4]
    $region17: #{tpu_custom_call.1} parent=1 // pred_fallthru
      _
    // Predicated region
    $region18: #{tpu_custom_call.1} parent=1 // pred_check
      _
    $region19: #{tpu_custom_call.1} parent=1 // pred_check_branch
      %71 = sbr.rel (0) target = $region21
    $region20: #{tpu_custom_call.1} parent=1 // pred_region
      %s73 = ssub.s32 16, 16
      %74 = vsyncadd [#allocation7], %s73
      %s76 = sshll.u32 [#allocation6], 4
      %s77 = int_to_ptr.vmem [resolvable:$true] %s76
      %79 = dma.vmem_to_hbm [thread:$0]  %s77, 16, %s2, [#allocation7]
    $region21: #{tpu_custom_call.1} parent=1 // pred_fallthru
      _
    // Predicated region
    $region22: #{tpu_custom_call.1} parent=1 // pred_check
      _
    $region23: #{tpu_custom_call.1} parent=1 // pred_check_branch
      %81 = sbr.rel (0) target = $region25
    $region24: #{tpu_custom_call.1} parent=1 // pred_region
      %82 = dma.done [#allocation4], 16
    $region25: #{tpu_custom_call.1} parent=1 // pred_fallthru
      _
    // Predicated region
    $region26: #{tpu_custom_call.1} parent=1 // pred_check
      _
    $region27: #{tpu_custom_call.1} parent=1 // pred_check_branch
      %84 = sbr.rel (0) target = $region29
    $region28: #{tpu_custom_call.1} parent=1 // pred_region
      %85 = dma.done [#allocation7], 16
    $region29: #{tpu_custom_call.1} parent=1 // pred_fallthru
      _
    %86 = vsyncpa [#allocation3], 1
    %87 = vsyncpa [#allocation4], 1
    %88 = vsyncpa [#allocation7], 1

</llo_original>
